<compile_context>
chip_gen: v7x
topology: tpu7x:2x2x1
jax: 0.10.0
libtpu: 0.0.40
codegen_flags: <defaults>
</compile_context>

<pallas_src>
import jax
import jax.numpy as jnp
from jax.experimental import pallas as pl
from jax.experimental.pallas import tpu as pltpu

EPS = 1e-5


def _round_up(v, m):
    return ((v + m - 1) // m) * m


def _prenorm_linear_kernel(x_ref, gamma_ref, beta_ref, w_ref, b_ref, o_ref):
    # x_ref:     (TR, D)   rows to normalize
    # gamma_ref: (1, D)    LayerNorm scale
    # beta_ref:  (1, D)    LayerNorm shift
    # w_ref:     (TH, D)   Linear weight tile, torch (H, D) layout
    # b_ref:     (1, TH)   Linear bias tile
    # o_ref:     (TR, TH)
    x = x_ref[...].astype(jnp.float32)

    # LayerNorm over the last dim (torch: biased variance, eps inside rsqrt).
    # Statistics in f32 regardless of input dtype.
    mean = jnp.mean(x, axis=-1, keepdims=True)
    centered = x - mean
    var = jnp.mean(centered * centered, axis=-1, keepdims=True)
    xn = centered * jax.lax.rsqrt(var + EPS)
    xn = xn * gamma_ref[...].astype(jnp.float32) + beta_ref[...].astype(jnp.float32)

    # Feed the MXU at the input/weight dtype (bf16 runs at native rate);
    # accumulate in f32.  Contract dim 1 of xn (D) with dim 1 of w (D):
    #   (TR, D) x (TH, D) -> (TR, TH)  ==  xn @ W^T, no transpose copy needed.
    xn = xn.astype(x_ref.dtype)
    y = jax.lax.dot_general(
        xn, w_ref[...],
        dimension_numbers=(((1,), (1,)), ((), ())),
        preferred_element_type=jnp.float32)
    y = y + b_ref[...].astype(jnp.float32)

    o_ref[...] = y.astype(o_ref.dtype)


def prenorm_linear(x, gamma, beta, weight, bias, *, tr=256, th=512):
    """PreNorm(dim, nn.Linear(dim, hidden)) forward.

    x:      (B, S, D)
    gamma:  (D,)   beta: (D,)
    weight: (H, D) torch-layout Linear weight (used as-is, no transpose copy)
    bias:   (H,)
    returns (B, S, H)

    tr: row-tile size (sweep 256/512/1024 on v6e, keep <=256-512 on v7x).
    th: hidden-tile size (multiple of 128; 256/512 are good defaults).
    """
    B, S, D = x.shape
    H = weight.shape[0]
    R = B * S

    # Row tiling: TR is a multiple of 8 (sublane); pad R up to a TR multiple.
    TR = min(tr, _round_up(R, 8))
    R_pad = _round_up(R, TR)

    # Hidden tiling: keep the output last dim lane-dense (multiple of 128).
    H_pad = _round_up(H, 128)
    TH = min(th, H_pad)
    H_pad = _round_up(H_pad, TH)

    x2 = x.reshape(R, D)
    if R_pad != R:
        x2 = jnp.pad(x2, ((0, R_pad - R), (0, 0)))

    w = weight
    b = bias
    if H_pad != H:
        w = jnp.pad(w, ((0, H_pad - H), (0, 0)))
        b = jnp.pad(b, ((0, H_pad - H),))

    gamma2 = gamma.reshape(1, D)
    beta2 = beta.reshape(1, D)
    b2 = b.reshape(1, H_pad)

    grid = (R_pad // TR, H_pad // TH)

    out = pl.pallas_call(
        _prenorm_linear_kernel,
        out_shape=jax.ShapeDtypeStruct((R_pad, H_pad), x.dtype),
        grid_spec=pltpu.PrefetchScalarGridSpec(
            num_scalar_prefetch=0,
            grid=grid,
            in_specs=[
                pl.BlockSpec((TR, D), lambda i, j: (i, 0)),   # x rows
                pl.BlockSpec((1, D), lambda i, j: (0, 0)),    # gamma
                pl.BlockSpec((1, D), lambda i, j: (0, 0)),    # beta
                pl.BlockSpec((TH, D), lambda i, j: (j, 0)),   # weight tile (H,D) layout
                pl.BlockSpec((1, TH), lambda i, j: (0, j)),   # bias tile
            ],
            out_specs=pl.BlockSpec((TR, TH), lambda i, j: (i, j)),
        ),
        compiler_params=pltpu.CompilerParams(
            # Rows and output columns are independent: both axes parallel
            # (sharded across TensorCores on v7x).
            dimension_semantics=("parallel", "parallel"),
            # Lift the default scoped VMEM limit while leaving headroom on
            # v7x's 64 MiB physical VMEM.
            vmem_limit_bytes=48 * 1024 * 1024,
        ),
    )(x2, gamma2, beta2, w, b2)

    return out[:R, :H].reshape(B, S, H)


def _reference(x, gamma, beta, weight, bias):
    xf = x.astype(jnp.float32)
    mean = jnp.mean(xf, axis=-1, keepdims=True)
    var = jnp.mean((xf - mean) ** 2, axis=-1, keepdims=True)
    xn = (xf - mean) / jnp.sqrt(var + EPS)
    xn = xn * gamma + beta
    return (xn @ weight.T + bias).astype(x.dtype)


if __name__ == "__main__":
    key = jax.random.PRNGKey(0)
    B, S, D, Hid = 2, 8, 32, 32

    k_x, k_g, k_b, k_w, k_bias = jax.random.split(key, 5)
    x = jax.random.normal(k_x, (B, S, D), dtype=jnp.float32)
    # nn.LayerNorm default init: gamma=1, beta=0 — perturb slightly but
    # deterministically so the affine path is actually exercised.
    gamma = 1.0 + 0.01 * jax.random.normal(k_g, (D,), dtype=jnp.float32)
    beta = 0.01 * jax.random.normal(k_b, (D,), dtype=jnp.float32)
    weight = 0.1 * jax.random.normal(k_w, (Hid, D), dtype=jnp.float32)
    bias = 0.1 * jax.random.normal(k_bias, (Hid,), dtype=jnp.float32)

    out = prenorm_linear(x, gamma, beta, weight, bias)
    jax.block_until_ready(out)

    ref = _reference(x, gamma, beta, weight, bias)
    assert out.shape == (B, S, Hid)
    assert jnp.allclose(out, ref, atol=1e-4, rtol=1e-4), "mismatch vs reference"

    print("KERNEL_OK")
</pallas_src>

<mosaic_0001>
module attributes {stable_mosaic.version = 11 : i64} {
  func.func @_prenorm_linear_kernel(%arg0: i32, %arg1: i32, %arg2: memref<16x32xf32, #tpu.memory_space<vmem>>, %arg3: memref<1x32xf32, #tpu.memory_space<vmem>>, %arg4: memref<1x32xf32, #tpu.memory_space<vmem>>, %arg5: memref<128x32xf32, #tpu.memory_space<vmem>>, %arg6: memref<1x128xf32, #tpu.memory_space<vmem>>, %arg7: memref<16x128xf32, #tpu.memory_space<vmem>>) attributes {dimension_semantics = [#tpu.dimension_semantics<parallel>, #tpu.dimension_semantics<parallel>], iteration_bounds = array<i64: 1, 1>, scalar_prefetch = 0 : i64, scratch_operands = 0 : i64, tpu.core_type = #tpu.core_type<tc>, window_params = [{transform_indices = @transform_0, window_bounds = array<i64: 16, 32>}, {pipeline_mode = #tpu.pipeline_mode<synchronous>, transform_indices = @transform_1, window_bounds = array<i64: 1, 32>}, {pipeline_mode = #tpu.pipeline_mode<synchronous>, transform_indices = @transform_2, window_bounds = array<i64: 1, 32>}, {transform_indices = @transform_3, window_bounds = array<i64: 128, 32>}, {transform_indices = @transform_4, window_bounds = array<i64: 1, 128>}, {transform_indices = @transform_5, window_bounds = array<i64: 16, 128>}]} {
    %c0 = arith.constant 0 : index
    %c0_0 = arith.constant 0 : index
    %0 = vector.load %arg2[%c0, %c0_0] : memref<16x32xf32, #tpu.memory_space<vmem>>, vector<16x32xf32>
    %cst = arith.constant dense<0.000000e+00> : vector<16xf32>
    %1 = vector.multi_reduction <add>, %0, %cst [1] : vector<16x32xf32> to vector<16xf32>
    %2 = vector.shape_cast %1 : vector<16xf32> to vector<16x1xf32>
    %cst_1 = arith.constant 3.200000e+01 : f32
    %3 = vector.broadcast %cst_1 : f32 to vector<16x1xf32>
    %4 = arith.divf %2, %3 : vector<16x1xf32>
    %5 = vector.broadcast %4 : vector<16x1xf32> to vector<16x32xf32>
    %6 = arith.subf %0, %5 : vector<16x32xf32>
    %7 = arith.mulf %6, %6 : vector<16x32xf32>
    %cst_2 = arith.constant dense<0.000000e+00> : vector<16xf32>
    %8 = vector.multi_reduction <add>, %7, %cst_2 [1] : vector<16x32xf32> to vector<16xf32>
    %9 = vector.shape_cast %8 : vector<16xf32> to vector<16x1xf32>
    %cst_3 = arith.constant 3.200000e+01 : f32
    %10 = vector.broadcast %cst_3 : f32 to vector<16x1xf32>
    %11 = arith.divf %9, %10 : vector<16x1xf32>
    %cst_4 = arith.constant 9.99999974E-6 : f32
    %12 = vector.broadcast %cst_4 : f32 to vector<16x1xf32>
    %13 = arith.addf %11, %12 : vector<16x1xf32>
    %14 = math.rsqrt %13 : vector<16x1xf32>
    %15 = vector.broadcast %14 : vector<16x1xf32> to vector<16x32xf32>
    %16 = arith.mulf %6, %15 : vector<16x32xf32>
    %c0_5 = arith.constant 0 : index
    %c0_6 = arith.constant 0 : index
    %17 = vector.load %arg3[%c0_5, %c0_6] : memref<1x32xf32, #tpu.memory_space<vmem>>, vector<1x32xf32>
    %18 = vector.broadcast %17 : vector<1x32xf32> to vector<16x32xf32>
    %19 = arith.mulf %16, %18 : vector<16x32xf32>
    %c0_7 = arith.constant 0 : index
    %c0_8 = arith.constant 0 : index
    %20 = vector.load %arg4[%c0_7, %c0_8] : memref<1x32xf32, #tpu.memory_space<vmem>>, vector<1x32xf32>
    %21 = vector.broadcast %20 : vector<1x32xf32> to vector<16x32xf32>
    %22 = arith.addf %19, %21 : vector<16x32xf32>
    %c0_9 = arith.constant 0 : index
    %c0_10 = arith.constant 0 : index
    %23 = vector.load %arg5[%c0_9, %c0_10] : memref<128x32xf32, #tpu.memory_space<vmem>>, vector<128x32xf32>
    %cst_11 = arith.constant dense<0.000000e+00> : vector<16x128xf32>
    %24 = tpu.matmul %22, %23, %cst_11 {dimension_numbers = #tpu.dot_dimension_numbers<[1], [1], [0], [0], [0, 0, 1, 0], [], []>} : vector<16x32xf32>, vector<128x32xf32>, vector<16x128xf32> -> vector<16x128xf32>
    %c0_12 = arith.constant 0 : index
    %c0_13 = arith.constant 0 : index
    %25 = vector.load %arg6[%c0_12, %c0_13] : memref<1x128xf32, #tpu.memory_space<vmem>>, vector<1x128xf32>
    %26 = vector.broadcast %25 : vector<1x128xf32> to vector<16x128xf32>
    %27 = arith.addf %24, %26 : vector<16x128xf32>
    %c0_14 = arith.constant 0 : index
    %c0_15 = arith.constant 0 : index
    %28 = vector.load %arg7[%c0_14, %c0_15] : memref<16x128xf32, #tpu.memory_space<vmem>>, vector<16x128xf32>
    tpu.vector_store %arg7[%c0_14, %c0_15], %27 {strides = array<i32>} : memref<16x128xf32, #tpu.memory_space<vmem>>, vector<16x128xf32>,
    return
  }
  func.func @transform_0(%arg0: i32, %arg1: i32) -> (i32, i32) {
    %c0_i32 = arith.constant 0 : i32
    %c0_i32_0 = arith.constant 0 : i32
    return %arg0, %c0_i32 : i32, i32
  }
  func.func @transform_1(%arg0: i32, %arg1: i32) -> (i32, i32) {
    %c0_i32 = arith.constant 0 : i32
    %c0_i32_0 = arith.constant 0 : i32
    %c0_i32_1 = arith.constant 0 : i32
    return %c0_i32, %c0_i32_0 : i32, i32
  }
  func.func @transform_2(%arg0: i32, %arg1: i32) -> (i32, i32) {
    %c0_i32 = arith.constant 0 : i32
    %c0_i32_0 = arith.constant 0 : i32
    %c0_i32_1 = arith.constant 0 : i32
    return %c0_i32, %c0_i32_0 : i32, i32
  }
  func.func @transform_3(%arg0: i32, %arg1: i32) -> (i32, i32) {
    %c0_i32 = arith.constant 0 : i32
    %c0_i32_0 = arith.constant 0 : i32
    return %arg1, %c0_i32 : i32, i32
  }
  func.func @transform_4(%arg0: i32, %arg1: i32) -> (i32, i32) {
    %c0_i32 = arith.constant 0 : i32
    %c0_i32_0 = arith.constant 0 : i32
    return %c0_i32, %arg1 : i32, i32
  }
  func.func @transform_5(%arg0: i32, %arg1: i32) -> (i32, i32) {
    %c0_i32 = arith.constant 0 : i32
    return %arg0, %arg1 : i32, i32
  }
}

</mosaic_0001>

<llo_original>
// kernel: tpu_custom_call.1
$region0: #{tpu_custom_call.1}
  #allocation0 [shape = 'u32[]', space=smem, size = 0x4, offset = 0x4, fixed_abs, tag = 'smem constant byte address 0x4 - core index']
  #allocation1 [shape = 'u32[144,128]{1,0:T(1,128)}', space=vmem, size = 0x12000, scoped, tag = 'internal scratch']
  %s0 = inlined_call_operand.vmem [shape: f32[16,32], index: 0, kind: input, shape index: {}]
  %s1 = inlined_call_operand.vmem [shape: f32[1,32], index: 1, kind: input, shape index: {}]
  %s2 = inlined_call_operand.vmem [shape: f32[1,32], index: 2, kind: input, shape index: {}]
  %s3 = inlined_call_operand.vmem [shape: f32[128,32], index: 3, kind: input, shape index: {}]
  %s4 = inlined_call_operand.vmem [shape: f32[1,128], index: 4, kind: input, shape index: {}]
  %s5 = inlined_call_operand.hbm [shape: f32[16,128], index: 5, kind: output, shape index: {}]
  %s6 = sld [smem:[#allocation0]]
  $region30: #{tpu_custom_call.1} parent=0
    _
  %s8 = ssub.s32 1, %s6
  %s9 = scalar_select 0, %s8, %s6
  $region1: #{tpu_custom_call.1} parent=0
    #allocation2 [shape = 'u8[8192]{0}', space=vmem, size = 0x2000, scoped, tag = 'output window, operand 0, single buffered']
    #allocation3 [shape = 's32[1]{0}', space=sflag, size = 0x4, scoped, tag = 'scoped memory for tpu_custom_call.1']
    %10 = vsyncpa [#allocation3], 0
    // Predicated region
    $region2: #{tpu_custom_call.1} parent=1 // pred_check
      _
    $region3: #{tpu_custom_call.1} parent=1 // pred_check_branch
      %12 = sbr.rel (0) target = $region5
    $region4: #{tpu_custom_call.1} parent=1 // pred_region
      _
    $region5: #{tpu_custom_call.1} parent=1 // pred_fallthru
      _
    // Predicated region
    $region6: #{tpu_custom_call.1} parent=1 // pred_check
      _
    $region7: #{tpu_custom_call.1} parent=1 // pred_check_branch
      %14 = sbr.rel (0) target = $region9
    $region8: #{tpu_custom_call.1} parent=1 // pred_region
      _
    $region9: #{tpu_custom_call.1} parent=1 // pred_fallthru
      _
    // Predicated region
    $region10: #{tpu_custom_call.1} parent=1 // pred_check
      _
    $region11: #{tpu_custom_call.1} parent=1 // pred_check_branch
      %16 = sbr.rel (0) target = $region13
    $region12: #{tpu_custom_call.1} parent=1 // pred_region
      _
    $region13: #{tpu_custom_call.1} parent=1 // pred_fallthru
      _
    // Predicated region
    $region14: #{tpu_custom_call.1} parent=1 // pred_check
      _
    $region15: #{tpu_custom_call.1} parent=1 // pred_check_branch
      %18 = sbr.rel (0) target = $region17
    $region16: #{tpu_custom_call.1} parent=1 // pred_region
      _
    $region17: #{tpu_custom_call.1} parent=1 // pred_fallthru
      _
    // Predicated region
    $region18: #{tpu_custom_call.1} parent=1 // pred_check
      _
    $region19: #{tpu_custom_call.1} parent=1 // pred_check_branch
      %20 = sbr.rel (0) target = $region21
    $region20: #{tpu_custom_call.1} parent=1 // pred_region
      _
    $region21: #{tpu_custom_call.1} parent=1 // pred_fallthru
      _
    %v21 = vld [vmem:[%s0] sm:$0xff]
    %v22 = vld [vmem:[%s0 + $0x8] sm:$0xff]
    %vm23 = vcmask 261120
    %v24 = vsel %vm23, %v21, 0.0
    %25 = vadd.xlane.f32.xlu0 %v24
    %v26 = vpop.xlane.xlu0 %25
    %v27 = vsel %vm23, %v22, 0.0
    %28 = vadd.xlane.f32.xlu0 %v27
    %v29 = vpop.xlane.xlu0 %28
    %v30 = vrcp.pop 32.0
    %v31 = vmul.f32 %v26, %v30
    %v32 = vmul.f32 %v29, %v30
    %v33 = vsub.f32 %v21, %v31
    %v34 = vsub.f32 %v22, %v32
    %v35 = vmul.f32 %v33, %v33
    %v36 = vmul.f32 %v34, %v34
    %v37 = vsel %vm23, %v35, 0.0
    %38 = vadd.xlane.f32.xlu0 %v37
    %v39 = vpop.xlane.xlu0 %38
    %v40 = vsel %vm23, %v36, 0.0
    %41 = vadd.xlane.f32.xlu0 %v40
    %v42 = vpop.xlane.xlu0 %41
    %v43 = vmul.f32 %v39, %v30
    %v44 = vmul.f32 %v42, %v30
    %v45 = vadd.f32 %v43, 1e-05
    %v46 = vadd.f32 %v44, 1e-05
    %v47 = vrsqrt.pop %v45
    %v48 = vrsqrt.pop %v46
    %v49 = vmul.f32 %v33, %v47
    %v50 = vmul.f32 %v34, %v48
    %v51 = vld [vmem:[%s1] sm:$0x1]
    %v53 = vlaneseq
    %v54 = vshrl.u32 %v53, 7
    %v55 = vsub.s32 0, %v54
    %v56 = vrot.slane %v51, %v55
    %v58 = vmul.f32 %v49, %v56
    %v59 = vmul.f32 %v50, %v56
    %v60 = vld [vmem:[%s2] sm:$0x1]
    %v62 = vlaneseq
    %v63 = vshrl.u32 %v62, 7
    %v64 = vsub.s32 0, %v63
    %v65 = vrot.slane %v60, %v64
    %v67 = vadd.f32 %v58, %v65
    %v68 = vadd.f32 %v59, %v65
    %v69 = vld [vmem:[%s3] sm:$0xff]
    %v70 = vld [vmem:[%s3 + $0x8] sm:$0xff]
    %v71 = vld [vmem:[%s3 + $0x10] sm:$0xff]
    %v72 = vld [vmem:[%s3 + $0x18] sm:$0xff]
    %v73 = vld [vmem:[%s3 + $0x20] sm:$0xff]
    %v74 = vld [vmem:[%s3 + $0x28] sm:$0xff]
    %v75 = vld [vmem:[%s3 + $0x30] sm:$0xff]
    %v76 = vld [vmem:[%s3 + $0x38] sm:$0xff]
    %v77 = vld [vmem:[%s3 + $0x40] sm:$0xff]
    %v78 = vld [vmem:[%s3 + $0x48] sm:$0xff]
    %v79 = vld [vmem:[%s3 + $0x50] sm:$0xff]
    %v80 = vld [vmem:[%s3 + $0x58] sm:$0xff]
    %v81 = vld [vmem:[%s3 + $0x60] sm:$0xff]
    %v82 = vld [vmem:[%s3 + $0x68] sm:$0xff]
    %v83 = vld [vmem:[%s3 + $0x70] sm:$0xff]
    %v84 = vld [vmem:[%s3 + $0x78] sm:$0xff]
    %v85 = vld [vmem:[%s4] sm:$0x1]
    %v87 = vlaneseq
    %v88 = vshrl.u32 %v87, 7
    %v89 = vsub.s32 0, %v88
    %v90 = vrot.slane %v85, %v89
    %v93 = vsel %vm23, %v67, 0
    %v96 = vsel %vm23, %v68, 0
    %v99 = vsel %vm23, %v69, 0
    %v102 = vsel %vm23, %v70, 0
    %v105 = vsel %vm23, %v71, 0
    %v108 = vsel %vm23, %v72, 0
    %v111 = vsel %vm23, %v73, 0
    %v114 = vsel %vm23, %v74, 0
    %v117 = vsel %vm23, %v75, 0
    %v120 = vsel %vm23, %v76, 0
    %v123 = vsel %vm23, %v77, 0
    %v126 = vsel %vm23, %v78, 0
    %v129 = vsel %vm23, %v79, 0
    %v132 = vsel %vm23, %v80, 0
    %v135 = vsel %vm23, %v81, 0
    %v138 = vsel %vm23, %v82, 0
    %v141 = vsel %vm23, %v83, 0
    %v144 = vsel %vm23, %v84, 0
    %146 = vmatprep.subr.mxu0 0.0
    %147 = vmatpush1.xpose.msra.mxu0 %v99
    %148 = vmatprep.subr.mxu0 0.0
    %149 = vmatpush1.xpose.msra.mxu0 %v102
    %150 = vmatprep.subr.mxu0 0.0
    %151 = vmatpush1.xpose.msra.mxu0 %v105
    %152 = vmatprep.subr.mxu0 0.0
    %153 = vmatpush1.xpose.msra.mxu0 %v108
    %154 = vmatprep.subr.mxu0 0.0
    %155 = vmatpush1.xpose.msra.mxu0 %v111
    %156 = vmatprep.subr.mxu0 0.0
    %157 = vmatpush1.xpose.msra.mxu0 %v114
    %158 = vmatprep.subr.mxu0 0.0
    %159 = vmatpush1.xpose.msra.mxu0 %v117
    %160 = vmatprep.subr.mxu0 0.0
    %161 = vmatpush1.xpose.msra.mxu0 %v120
    %162 = vmatprep.subr.mxu0 0.0
    %163 = vmatpush1.xpose.msra.mxu0 %v123
    %164 = vmatprep.subr.mxu0 0.0
    %165 = vmatpush1.xpose.msra.mxu0 %v126
    %166 = vmatprep.subr.mxu0 0.0
    %167 = vmatpush1.xpose.msra.mxu0 %v129
    %168 = vmatprep.subr.mxu0 0.0
    %169 = vmatpush1.xpose.msra.mxu0 %v132
    %170 = vmatprep.subr.mxu0 0.0
    %171 = vmatpush1.xpose.msra.mxu0 %v135
    %172 = vmatprep.subr.mxu0 0.0
    %173 = vmatpush1.xpose.msra.mxu0 %v138
    %174 = vmatprep.subr.mxu0 0.0
    %175 = vmatpush1.xpose.msra.mxu0 %v141
    %176 = vmatprep.subr.mxu0 0.0
    %177 = vmatpush1.xpose.msra.mxu0 %v144
    %178 = vmatprep.subr.mxu0 0.0
    %179 = vmatpush1.xpose.msra.mxu0 0.0
    %180 = vmatprep.subr.mxu0 0.0
    %181 = vmatpush1.xpose.msra.mxu0 0.0
    %182 = vmatprep.subr.mxu0 0.0
    %183 = vmatpush1.xpose.msra.mxu0 0.0
    %184 = vmatprep.subr.mxu0 0.0
    %185 = vmatpush1.xpose.msra.mxu0 0.0
    %186 = vmatprep.subr.mxu0 0.0
    %187 = vmatpush1.xpose.msra.mxu0 0.0
    %188 = vmatprep.subr.mxu0 0.0
    %189 = vmatpush1.xpose.msra.mxu0 0.0
    %190 = vmatprep.subr.mxu0 0.0
    %191 = vmatpush1.xpose.msra.mxu0 0.0
    %192 = vmatprep.subr.mxu0 0.0
    %193 = vmatpush1.xpose.msra.mxu0 0.0
    %194 = vmatprep.subr.mxu0 0.0
    %195 = vmatpush1.xpose.msra.mxu0 0.0
    %196 = vmatprep.subr.mxu0 0.0
    %197 = vmatpush1.xpose.msra.mxu0 0.0
    %198 = vmatprep.subr.mxu0 0.0
    %199 = vmatpush1.xpose.msra.mxu0 0.0
    %200 = vmatprep.subr.mxu0 0.0
    %201 = vmatpush1.xpose.msra.mxu0 0.0
    %202 = vmatprep.subr.mxu0 0.0
    %203 = vmatpush1.xpose.msra.mxu0 0.0
    %204 = vmatprep.subr.mxu0 0.0
    %205 = vmatpush1.xpose.msra.mxu0 0.0
    %206 = vmatprep.subr.mxu0 0.0
    %207 = vmatpush1.xpose.msra.mxu0 0.0
    %208 = vmatprep.subr.mxu0 0.0
    %209 = vmatpush1.xpose.msra.mxu0 0.0
    %210 = vmatprep.mubr.f32.mxu0 0.0
    %211 = vmatmul.mubr.f32.gmra.mrb[0].mxu0 %v93
    %v212 = vpop.f32.mrb[0].mxu0
    %v213 = vadd.f32 %v90, %v212
    %v214 = vpop.f32.mrb[0].mxu0
    %215 = vmatprep.mubr.f32.mxu0 0.0
    %216 = vmatmul.mubr.f32.gmra.mrb[0].mxu0 %v96
    %v217 = vpop.f32.mrb[0].mxu0
    %v218 = vadd.f32 %v90, %v217
    %v219 = vpop.f32.mrb[0].mxu0
    %220 = vdwg.mxu0
    %221 = vst [vmem:[#allocation2] sm:$0xff] %v213
    %222 = vst [vmem:[#allocation2 + $0x8] sm:$0xff] %v218
    // Predicated region
    $region22: #{tpu_custom_call.1} parent=1 // pred_check
      _
    $region23: #{tpu_custom_call.1} parent=1 // pred_check_branch
      %224 = sbr.rel (0) target = $region25
    $region24: #{tpu_custom_call.1} parent=1 // pred_region
      %s226 = ssub.s32 256, 256
      %227 = vsyncadd [#allocation3], %s226
      %s228 = sshll.u32 [#allocation2], 4
      %s229 = int_to_ptr.vmem [resolvable:$true] %s228
      %234 = dma.vmem_to_hbm [thread:$0]  %s229, 256, %s5, [#allocation3], 128, 128, 8
    $region25: #{tpu_custom_call.1} parent=1 // pred_fallthru
      _
    // Predicated region
    $region26: #{tpu_custom_call.1} parent=1 // pred_check
      _
    $region27: #{tpu_custom_call.1} parent=1 // pred_check_branch
      %236 = sbr.rel (0) target = $region29
    $region28: #{tpu_custom_call.1} parent=1 // pred_region
      %237 = dma.done [#allocation3], 256
    $region29: #{tpu_custom_call.1} parent=1 // pred_fallthru
      _
    %238 = vsyncpa [#allocation3], 1

</llo_original>
